<compile_context>
chip_gen: v7x
topology: tpu7x:2x2x1
jax: 0.10.0
libtpu: 0.0.40
codegen_flags: <defaults>
</compile_context>

<pallas_src>
import jax
import jax.numpy as jnp
import numpy as np
from jax.experimental import pallas as pl
from jax.experimental.pallas import tpu as pltpu

# Model hyper-parameters (small, consistent with the module's usage)
EMBED_DIM = 32
NUM_HEADS = 4
FF_DIM = 64
HEAD_DIM = EMBED_DIM // NUM_HEADS
LN_EPS = 1e-5  # PyTorch nn.LayerNorm default


def _layernorm(x, gamma, beta):
    mean = jnp.mean(x, axis=-1, keepdims=True)
    var = jnp.mean((x - mean) ** 2, axis=-1, keepdims=True)
    return (x - mean) * jax.lax.rsqrt(var + LN_EPS) * gamma + beta


def transformer_block_kernel(x_ref, wqkv_ref, wo_ref, w1_ref, w2_ref,
                             bias_ref, out_ref):
    E, F, H, D = EMBED_DIM, FF_DIM, NUM_HEADS, HEAD_DIM

    x = x_ref[...]        # (S, E) f32 -- tokens of ONE batch element
    bias = bias_ref[...]  # (8, 128) packed bias / LayerNorm vectors (f32)

    bqkv = bias[0:1, :3 * E]
    bo = bias[1:2, :E]
    g1, be1 = bias[2:3, :E], bias[3:4, :E]
    b1 = bias[4:5, :F]
    b2 = bias[5:6, :E]
    g2, be2 = bias[6:7, :E], bias[7:8, :E]

    # ---- fused QKV projection (1/sqrt(D) folded into Q weight/bias offline).
    # bf16 MXU operands, f32 accumulate & elementwise.
    qkv = jnp.dot(x.astype(jnp.bfloat16), wqkv_ref[...],
                  preferred_element_type=jnp.float32) + bqkv          # (S, 3E)
    q_b = qkv[:, :E].astype(jnp.bfloat16)
    k_b = qkv[:, E:2 * E].astype(jnp.bfloat16)
    v_b = qkv[:, 2 * E:].astype(jnp.bfloat16)

    # ---- per-head attention; NO mask (grid already isolates one batch elem).
    heads = []
    for h in range(H):  # static unroll over heads
        sl = slice(h * D, (h + 1) * D)
        s = jnp.einsum('qd,kd->qk', q_b[:, sl], k_b[:, sl],
                       preferred_element_type=jnp.float32)            # (S, S)
        s = s - jnp.max(s, axis=-1, keepdims=True)
        p = jnp.exp(s)
        p = p * pl.reciprocal(jnp.sum(p, axis=-1, keepdims=True), approx=True)
        heads.append(jnp.dot(p.astype(jnp.bfloat16), v_b[:, sl],
                             preferred_element_type=jnp.float32))     # (S, D)

    # ---- head concat along lanes, then ONE K=E output-projection matmul.
    o_cat = jnp.concatenate(heads, axis=-1)                           # (S, E)
    attn = jnp.dot(o_cat.astype(jnp.bfloat16), wo_ref[...],
                   preferred_element_type=jnp.float32) + bo

    # ---- residual + LayerNorm 1 (f32) ----
    out1 = _layernorm(x + attn, g1, be1)

    # ---- FFN: Linear -> ReLU -> (Dropout=id) -> Linear -> (Dropout=id) ----
    h1 = jnp.dot(out1.astype(jnp.bfloat16), w1_ref[...],
                 preferred_element_type=jnp.float32) + b1
    h1 = jnp.maximum(h1, 0.0)
    ffn = jnp.dot(h1.astype(jnp.bfloat16), w2_ref[...],
                  preferred_element_type=jnp.float32) + b2

    # ---- residual + LayerNorm 2 (f32) ----
    out_ref[...] = _layernorm(out1 + ffn, g2, be2)


@jax.jit
def transformer_block(x_sbe, packed):
    """x_sbe: (S, B, E) float32 -- PyTorch nn.MultiheadAttention default layout."""
    S, B, E = x_sbe.shape
    assert E == EMBED_DIM
    H, D, F = NUM_HEADS, HEAD_DIM, FF_DIM

    # Transpose at the boundary so the grid can iterate over batch elements.
    x_bse = jnp.transpose(x_sbe, (1, 0, 2))  # (B, S, E)

    flops_per_b = (2 * S * E * 3 * E            # QKV projection
                   + H * 4 * S * S * D          # scores + P@V
                   + 2 * S * E * E              # output projection
                   + 2 * S * E * F + 2 * S * F * E)  # FFN
    transc_per_b = H * S * S + H * S + 2 * S
    bytes_accessed = (4 * 2 * B * S * E                              # x + out (f32)
                      + 2 * (E * 3 * E + E * E + E * F + F * E)      # bf16 weights
                      + 4 * 8 * 128)                                 # bias tile

    out = pl.pallas_call(
        transformer_block_kernel,
        out_shape=jax.ShapeDtypeStruct((B, S, E), jnp.float32),
        grid=(B,),
        in_specs=[
            pl.BlockSpec((None, S, E), lambda b: (b, 0, 0)),  # x: one batch / step
            pl.BlockSpec((E, 3 * E), lambda b: (0, 0)),       # fused QKV weight (resident)
            pl.BlockSpec((E, E), lambda b: (0, 0)),           # output projection
            pl.BlockSpec((E, F), lambda b: (0, 0)),           # FFN up
            pl.BlockSpec((F, E), lambda b: (0, 0)),           # FFN down
            pl.BlockSpec((8, 128), lambda b: (0, 0)),         # packed bias / LN vectors
        ],
        out_specs=pl.BlockSpec((None, S, E), lambda b: (b, 0, 0)),
        compiler_params=pltpu.CompilerParams(
            dimension_semantics=("parallel",),        # megacore-shardable on v7x
            vmem_limit_bytes=32 * 1024 * 1024,
        ),
        cost_estimate=pl.CostEstimate(
            flops=B * flops_per_b,
            transcendentals=B * transc_per_b,
            bytes_accessed=bytes_accessed,
        ),
    )(x_bse, packed["wqkv_t"], packed["wo_t"], packed["w1_t"],
      packed["w2_t"], packed["bias_pack"])

    return jnp.transpose(out, (1, 0, 2))  # back to (S, B, E)


# ------------------------------ parameter init ------------------------------
def init_params(key):
    ks = jax.random.split(key, 12)
    s = 0.05
    E, F = EMBED_DIM, FF_DIM
    # Weights stored pre-transposed so the math is x @ W_t (== x @ W.T for the
    # equivalent PyTorch nn.Linear / in_proj weights).
    return {
        "wq_t": jax.random.normal(ks[0], (E, E), jnp.float32) * s,
        "wk_t": jax.random.normal(ks[1], (E, E), jnp.float32) * s,
        "wv_t": jax.random.normal(ks[2], (E, E), jnp.float32) * s,
        "bq": jax.random.normal(ks[3], (1, E), jnp.float32) * s,
        "bk": jax.random.normal(ks[4], (1, E), jnp.float32) * s,
        "bv": jax.random.normal(ks[5], (1, E), jnp.float32) * s,
        "wo_t": jax.random.normal(ks[6], (E, E), jnp.float32) * s,
        "bo": jax.random.normal(ks[7], (1, E), jnp.float32) * s,
        "ln1_g": jnp.ones((1, E), jnp.float32),
        "ln1_b": jnp.zeros((1, E), jnp.float32),
        "w1_t": jax.random.normal(ks[8], (E, F), jnp.float32) * s,
        "b1": jax.random.normal(ks[9], (1, F), jnp.float32) * s,
        "w2_t": jax.random.normal(ks[10], (F, E), jnp.float32) * s,
        "b2": jax.random.normal(ks[11], (1, E), jnp.float32) * s,
        "ln2_g": jnp.ones((1, E), jnp.float32),
        "ln2_b": jnp.zeros((1, E), jnp.float32),
    }


def pack_params(params):
    """One-time constant folding: fuse QKV, fold the attention scale, cast MXU
    weights to bf16, and pack all (1, k) bias / LayerNorm vectors into a single
    (8, 128) f32 tile."""
    E, F = EMBED_DIM, FF_DIM
    scale = jnp.float32(1.0 / np.sqrt(HEAD_DIM))
    wqkv_t = jnp.concatenate(
        [params["wq_t"] * scale, params["wk_t"], params["wv_t"]], axis=1)  # (E, 3E)
    bqkv = jnp.concatenate(
        [params["bq"] * scale, params["bk"], params["bv"]], axis=1)        # (1, 3E)

    bias_pack = jnp.zeros((8, 128), jnp.float32)
    bias_pack = bias_pack.at[0, :3 * E].set(bqkv[0])
    bias_pack = bias_pack.at[1, :E].set(params["bo"][0])
    bias_pack = bias_pack.at[2, :E].set(params["ln1_g"][0])
    bias_pack = bias_pack.at[3, :E].set(params["ln1_b"][0])
    bias_pack = bias_pack.at[4, :F].set(params["b1"][0])
    bias_pack = bias_pack.at[5, :E].set(params["b2"][0])
    bias_pack = bias_pack.at[6, :E].set(params["ln2_g"][0])
    bias_pack = bias_pack.at[7, :E].set(params["ln2_b"][0])

    return {
        "wqkv_t": wqkv_t.astype(jnp.bfloat16),
        "wo_t": params["wo_t"].astype(jnp.bfloat16),
        "w1_t": params["w1_t"].astype(jnp.bfloat16),
        "w2_t": params["w2_t"].astype(jnp.bfloat16),
        "bias_pack": bias_pack,
    }


# ---------------------------- pure-JAX reference ----------------------------
def _reference_single(x, p):
    q = x @ p["wq_t"] + p["bq"]
    k = x @ p["wk_t"] + p["bk"]
    v = x @ p["wv_t"] + p["bv"]
    scale = 1.0 / np.sqrt(HEAD_DIM)
    outs = []
    for h in range(NUM_HEADS):
        sl = slice(h * HEAD_DIM, (h + 1) * HEAD_DIM)
        s = (q[:, sl] @ k[:, sl].T) * scale
        s = jax.nn.softmax(s, axis=-1)
        outs.append(s @ v[:, sl])
    attn = jnp.concatenate(outs, axis=-1) @ p["wo_t"] + p["bo"]
    out1 = _layernorm(x + attn, p["ln1_g"], p["ln1_b"])
    h1 = jnp.maximum(out1 @ p["w1_t"] + p["b1"], 0.0)
    ffn = h1 @ p["w2_t"] + p["b2"]
    return _layernorm(out1 + ffn, p["ln2_g"], p["ln2_b"])


def reference(x_sbe, params):
    x = jnp.transpose(x_sbe, (1, 0, 2))  # (B, S, E)
    out = jax.vmap(lambda xb: _reference_single(xb, params))(x)
    return jnp.transpose(out, (1, 0, 2))  # (S, B, E)


if __name__ == "__main__":
    key = jax.random.PRNGKey(0)
    kx, kp = jax.random.split(key)

    SEQ, BATCH = 8, 2
    x = jax.random.normal(kx, (SEQ, BATCH, EMBED_DIM), jnp.float32)  # (S, B, E)
    params = init_params(kp)
    packed = pack_params(params)

    out = jax.block_until_ready(transformer_block(x, packed))
    ref = jax.block_until_ready(reference(x, params))

    # Tolerance accommodates bf16 MXU operands + the EUP approximate reciprocal
    # in the softmax (few-percent worst case); any real bug produces O(1) errors.
    np.testing.assert_allclose(np.asarray(out), np.asarray(ref),
                               rtol=3e-2, atol=3e-2)

    # TODO(synk): dropout is treated as identity (eval mode); training-mode RNG
    # dropout masks are not reproduced.
    print("KERNEL_OK")
</pallas_src>

<mosaic_0001>
module attributes {stable_mosaic.version = 11 : i64} {
  func.func @transformer_block_kernel(%arg0: i32, %arg1: memref<1x8x32xf32, #tpu.memory_space<vmem>>, %arg2: memref<32x96xbf16, #tpu.memory_space<vmem>>, %arg3: memref<32x32xbf16, #tpu.memory_space<vmem>>, %arg4: memref<32x64xbf16, #tpu.memory_space<vmem>>, %arg5: memref<64x32xbf16, #tpu.memory_space<vmem>>, %arg6: memref<8x128xf32, #tpu.memory_space<vmem>>, %arg7: memref<1x8x32xf32, #tpu.memory_space<vmem>>) attributes {dimension_semantics = [#tpu.dimension_semantics<parallel>], iteration_bounds = array<i64: 2>, scalar_prefetch = 0 : i64, scratch_operands = 0 : i64, tpu.core_type = #tpu.core_type<tc>, window_params = [{transform_indices = @transform_0, window_bounds = array<i64: 1, 8, 32>}, {pipeline_mode = #tpu.pipeline_mode<synchronous>, transform_indices = @transform_1, window_bounds = array<i64: 32, 96>}, {pipeline_mode = #tpu.pipeline_mode<synchronous>, transform_indices = @transform_2, window_bounds = array<i64: 32, 32>}, {pipeline_mode = #tpu.pipeline_mode<synchronous>, transform_indices = @transform_3, window_bounds = array<i64: 32, 64>}, {pipeline_mode = #tpu.pipeline_mode<synchronous>, transform_indices = @transform_4, window_bounds = array<i64: 64, 32>}, {pipeline_mode = #tpu.pipeline_mode<synchronous>, transform_indices = @transform_5, window_bounds = array<i64: 8, 128>}, {transform_indices = @transform_6, window_bounds = array<i64: 1, 8, 32>}]} {
    %c0 = arith.constant 0 : index
    %c0_0 = arith.constant 0 : index
    %c0_1 = arith.constant 0 : index
    %0 = vector.load %arg1[%c0, %c0_0, %c0_1] : memref<1x8x32xf32, #tpu.memory_space<vmem>>, vector<1x8x32xf32>
    %1 = vector.shape_cast %0 : vector<1x8x32xf32> to vector<8x32xf32>
    %c0_2 = arith.constant 0 : index
    %c0_3 = arith.constant 0 : index
    %2 = vector.load %arg6[%c0_2, %c0_3] : memref<8x128xf32, #tpu.memory_space<vmem>>, vector<8x128xf32>
    %3 = vector.extract_strided_slice %2 {offsets = [0, 0], sizes = [1, 96], strides = [1, 1]} : vector<8x128xf32> to vector<1x96xf32>
    %4 = vector.extract_strided_slice %2 {offsets = [1, 0], sizes = [1, 32], strides = [1, 1]} : vector<8x128xf32> to vector<1x32xf32>
    %5 = vector.extract_strided_slice %2 {offsets = [2, 0], sizes = [1, 32], strides = [1, 1]} : vector<8x128xf32> to vector<1x32xf32>
    %6 = vector.extract_strided_slice %2 {offsets = [3, 0], sizes = [1, 32], strides = [1, 1]} : vector<8x128xf32> to vector<1x32xf32>
    %7 = vector.extract_strided_slice %2 {offsets = [4, 0], sizes = [1, 64], strides = [1, 1]} : vector<8x128xf32> to vector<1x64xf32>
    %8 = vector.extract_strided_slice %2 {offsets = [5, 0], sizes = [1, 32], strides = [1, 1]} : vector<8x128xf32> to vector<1x32xf32>
    %9 = vector.extract_strided_slice %2 {offsets = [6, 0], sizes = [1, 32], strides = [1, 1]} : vector<8x128xf32> to vector<1x32xf32>
    %10 = vector.extract_strided_slice %2 {offsets = [7, 0], sizes = [1, 32], strides = [1, 1]} : vector<8x128xf32> to vector<1x32xf32>
    %11 = arith.truncf %1 : vector<8x32xf32> to vector<8x32xbf16>
    %c0_4 = arith.constant 0 : index
    %c0_5 = arith.constant 0 : index
    %12 = vector.load %arg2[%c0_4, %c0_5] : memref<32x96xbf16, #tpu.memory_space<vmem>>, vector<32x96xbf16>
    %cst = arith.constant dense<0.000000e+00> : vector<8x96xf32>
    %13 = tpu.matmul %11, %12, %cst {dimension_numbers = #tpu.dot_dimension_numbers<[1], [0], [0], [1], [0, 0, 1, 1], [], []>} : vector<8x32xbf16>, vector<32x96xbf16>, vector<8x96xf32> -> vector<8x96xf32>
    %14 = vector.broadcast %3 : vector<1x96xf32> to vector<8x96xf32>
    %15 = arith.addf %13, %14 : vector<8x96xf32>
    %16 = vector.extract_strided_slice %15 {offsets = [0, 0], sizes = [8, 32], strides = [1, 1]} : vector<8x96xf32> to vector<8x32xf32>
    %17 = arith.truncf %16 : vector<8x32xf32> to vector<8x32xbf16>
    %18 = vector.extract_strided_slice %15 {offsets = [0, 32], sizes = [8, 32], strides = [1, 1]} : vector<8x96xf32> to vector<8x32xf32>
    %19 = arith.truncf %18 : vector<8x32xf32> to vector<8x32xbf16>
    %20 = vector.extract_strided_slice %15 {offsets = [0, 64], sizes = [8, 32], strides = [1, 1]} : vector<8x96xf32> to vector<8x32xf32>
    %21 = arith.truncf %20 : vector<8x32xf32> to vector<8x32xbf16>
    %22 = vector.extract_strided_slice %17 {offsets = [0, 0], sizes = [8, 8], strides = [1, 1]} : vector<8x32xbf16> to vector<8x8xbf16>
    %23 = vector.extract_strided_slice %19 {offsets = [0, 0], sizes = [8, 8], strides = [1, 1]} : vector<8x32xbf16> to vector<8x8xbf16>
    "tpu.trace_start"() <{level = 10 : i32, message = "qd,kd->qk"}> : () -> ()
    %cst_6 = arith.constant dense<0.000000e+00> : vector<8x8xf32>
    %24 = tpu.matmul %22, %23, %cst_6 {dimension_numbers = #tpu.dot_dimension_numbers<[1], [1], [0], [0], [0, 0, 1, 0], [], []>} : vector<8x8xbf16>, vector<8x8xbf16>, vector<8x8xf32> -> vector<8x8xf32>
    "tpu.trace_stop"() : () -> ()
    %cst_7 = arith.constant dense<0xFF800000> : vector<8xf32>
    %25 = vector.multi_reduction <maximumf>, %24, %cst_7 [1] : vector<8x8xf32> to vector<8xf32>
    %26 = vector.shape_cast %25 : vector<8xf32> to vector<8x1xf32>
    %27 = vector.broadcast %26 : vector<8x1xf32> to vector<8x8xf32>
    %28 = arith.subf %24, %27 : vector<8x8xf32>
    %29 = math.exp %28 : vector<8x8xf32>
    %cst_8 = arith.constant dense<0.000000e+00> : vector<8xf32>
    %30 = vector.multi_reduction <add>, %29, %cst_8 [1] : vector<8x8xf32> to vector<8xf32>
    %31 = vector.shape_cast %30 : vector<8xf32> to vector<8x1xf32>
    %32 = tpu.reciprocal %31 {approx = true} : vector<8x1xf32> -> vector<8x1xf32>
    %33 = vector.broadcast %32 : vector<8x1xf32> to vector<8x8xf32>
    %34 = arith.mulf %29, %33 : vector<8x8xf32>
    %35 = arith.truncf %34 : vector<8x8xf32> to vector<8x8xbf16>
    %36 = vector.extract_strided_slice %21 {offsets = [0, 0], sizes = [8, 8], strides = [1, 1]} : vector<8x32xbf16> to vector<8x8xbf16>
    %cst_9 = arith.constant dense<0.000000e+00> : vector<8x8xf32>
    %37 = tpu.matmul %35, %36, %cst_9 {dimension_numbers = #tpu.dot_dimension_numbers<[1], [0], [0], [1], [0, 0, 1, 1], [], []>} : vector<8x8xbf16>, vector<8x8xbf16>, vector<8x8xf32> -> vector<8x8xf32>
    %38 = vector.extract_strided_slice %17 {offsets = [0, 8], sizes = [8, 8], strides = [1, 1]} : vector<8x32xbf16> to vector<8x8xbf16>
    %39 = vector.extract_strided_slice %19 {offsets = [0, 8], sizes = [8, 8], strides = [1, 1]} : vector<8x32xbf16> to vector<8x8xbf16>
    "tpu.trace_start"() <{level = 10 : i32, message = "qd,kd->qk"}> : () -> ()
    %cst_10 = arith.constant dense<0.000000e+00> : vector<8x8xf32>
    %40 = tpu.matmul %38, %39, %cst_10 {dimension_numbers = #tpu.dot_dimension_numbers<[1], [1], [0], [0], [0, 0, 1, 0], [], []>} : vector<8x8xbf16>, vector<8x8xbf16>, vector<8x8xf32> -> vector<8x8xf32>
    "tpu.trace_stop"() : () -> ()
    %cst_11 = arith.constant dense<0xFF800000> : vector<8xf32>
    %41 = vector.multi_reduction <maximumf>, %40, %cst_11 [1] : vector<8x8xf32> to vector<8xf32>
    %42 = vector.shape_cast %41 : vector<8xf32> to vector<8x1xf32>
    %43 = vector.broadcast %42 : vector<8x1xf32> to vector<8x8xf32>
    %44 = arith.subf %40, %43 : vector<8x8xf32>
    %45 = math.exp %44 : vector<8x8xf32>
    %cst_12 = arith.constant dense<0.000000e+00> : vector<8xf32>
    %46 = vector.multi_reduction <add>, %45, %cst_12 [1] : vector<8x8xf32> to vector<8xf32>
    %47 = vector.shape_cast %46 : vector<8xf32> to vector<8x1xf32>
    %48 = tpu.reciprocal %47 {approx = true} : vector<8x1xf32> -> vector<8x1xf32>
    %49 = vector.broadcast %48 : vector<8x1xf32> to vector<8x8xf32>
    %50 = arith.mulf %45, %49 : vector<8x8xf32>
    %51 = arith.truncf %50 : vector<8x8xf32> to vector<8x8xbf16>
    %52 = vector.extract_strided_slice %21 {offsets = [0, 8], sizes = [8, 8], strides = [1, 1]} : vector<8x32xbf16> to vector<8x8xbf16>
    %cst_13 = arith.constant dense<0.000000e+00> : vector<8x8xf32>
    %53 = tpu.matmul %51, %52, %cst_13 {dimension_numbers = #tpu.dot_dimension_numbers<[1], [0], [0], [1], [0, 0, 1, 1], [], []>} : vector<8x8xbf16>, vector<8x8xbf16>, vector<8x8xf32> -> vector<8x8xf32>
    %54 = vector.extract_strided_slice %17 {offsets = [0, 16], sizes = [8, 8], strides = [1, 1]} : vector<8x32xbf16> to vector<8x8xbf16>
    %55 = vector.extract_strided_slice %19 {offsets = [0, 16], sizes = [8, 8], strides = [1, 1]} : vector<8x32xbf16> to vector<8x8xbf16>
    "tpu.trace_start"() <{level = 10 : i32, message = "qd,kd->qk"}> : () -> ()
    %cst_14 = arith.constant dense<0.000000e+00> : vector<8x8xf32>
    %56 = tpu.matmul %54, %55, %cst_14 {dimension_numbers = #tpu.dot_dimension_numbers<[1], [1], [0], [0], [0, 0, 1, 0], [], []>} : vector<8x8xbf16>, vector<8x8xbf16>, vector<8x8xf32> -> vector<8x8xf32>
    "tpu.trace_stop"() : () -> ()
    %cst_15 = arith.constant dense<0xFF800000> : vector<8xf32>
    %57 = vector.multi_reduction <maximumf>, %56, %cst_15 [1] : vector<8x8xf32> to vector<8xf32>
    %58 = vector.shape_cast %57 : vector<8xf32> to vector<8x1xf32>
    %59 = vector.broadcast %58 : vector<8x1xf32> to vector<8x8xf32>
    %60 = arith.subf %56, %59 : vector<8x8xf32>
    %61 = math.exp %60 : vector<8x8xf32>
    %cst_16 = arith.constant dense<0.000000e+00> : vector<8xf32>
    %62 = vector.multi_reduction <add>, %61, %cst_16 [1] : vector<8x8xf32> to vector<8xf32>
    %63 = vector.shape_cast %62 : vector<8xf32> to vector<8x1xf32>
    %64 = tpu.reciprocal %63 {approx = true} : vector<8x1xf32> -> vector<8x1xf32>
    %65 = vector.broadcast %64 : vector<8x1xf32> to vector<8x8xf32>
    %66 = arith.mulf %61, %65 : vector<8x8xf32>
    %67 = arith.truncf %66 : vector<8x8xf32> to vector<8x8xbf16>
    %68 = vector.extract_strided_slice %21 {offsets = [0, 16], sizes = [8, 8], strides = [1, 1]} : vector<8x32xbf16> to vector<8x8xbf16>
    %cst_17 = arith.constant dense<0.000000e+00> : vector<8x8xf32>
    %69 = tpu.matmul %67, %68, %cst_17 {dimension_numbers = #tpu.dot_dimension_numbers<[1], [0], [0], [1], [0, 0, 1, 1], [], []>} : vector<8x8xbf16>, vector<8x8xbf16>, vector<8x8xf32> -> vector<8x8xf32>
    %70 = vector.extract_strided_slice %17 {offsets = [0, 24], sizes = [8, 8], strides = [1, 1]} : vector<8x32xbf16> to vector<8x8xbf16>
    %71 = vector.extract_strided_slice %19 {offsets = [0, 24], sizes = [8, 8], strides = [1, 1]} : vector<8x32xbf16> to vector<8x8xbf16>
    "tpu.trace_start"() <{level = 10 : i32, message = "qd,kd->qk"}> : () -> ()
    %cst_18 = arith.constant dense<0.000000e+00> : vector<8x8xf32>
    %72 = tpu.matmul %70, %71, %cst_18 {dimension_numbers = #tpu.dot_dimension_numbers<[1], [1], [0], [0], [0, 0, 1, 0], [], []>} : vector<8x8xbf16>, vector<8x8xbf16>, vector<8x8xf32> -> vector<8x8xf32>
    "tpu.trace_stop"() : () -> ()
    %cst_19 = arith.constant dense<0xFF800000> : vector<8xf32>
    %73 = vector.multi_reduction <maximumf>, %72, %cst_19 [1] : vector<8x8xf32> to vector<8xf32>
    %74 = vector.shape_cast %73 : vector<8xf32> to vector<8x1xf32>
    %75 = vector.broadcast %74 : vector<8x1xf32> to vector<8x8xf32>
    %76 = arith.subf %72, %75 : vector<8x8xf32>
    %77 = math.exp %76 : vector<8x8xf32>
    %cst_20 = arith.constant dense<0.000000e+00> : vector<8xf32>
    %78 = vector.multi_reduction <add>, %77, %cst_20 [1] : vector<8x8xf32> to vector<8xf32>
    %79 = vector.shape_cast %78 : vector<8xf32> to vector<8x1xf32>
    %80 = tpu.reciprocal %79 {approx = true} : vector<8x1xf32> -> vector<8x1xf32>
    %81 = vector.broadcast %80 : vector<8x1xf32> to vector<8x8xf32>
    %82 = arith.mulf %77, %81 : vector<8x8xf32>
    %83 = arith.truncf %82 : vector<8x8xf32> to vector<8x8xbf16>
    %84 = vector.extract_strided_slice %21 {offsets = [0, 24], sizes = [8, 8], strides = [1, 1]} : vector<8x32xbf16> to vector<8x8xbf16>
    %cst_21 = arith.constant dense<0.000000e+00> : vector<8x8xf32>
    %85 = tpu.matmul %83, %84, %cst_21 {dimension_numbers = #tpu.dot_dimension_numbers<[1], [0], [0], [1], [0, 0, 1, 1], [], []>} : vector<8x8xbf16>, vector<8x8xbf16>, vector<8x8xf32> -> vector<8x8xf32>
    %86 = tpu.concatenate %37, %53, %69, %85 in 1 : vector<8x8xf32>, vector<8x8xf32>, vector<8x8xf32>, vector<8x8xf32> -> vector<8x32xf32>
    %87 = arith.truncf %86 : vector<8x32xf32> to vector<8x32xbf16>
    %c0_22 = arith.constant 0 : index
    %c0_23 = arith.constant 0 : index
    %88 = vector.load %arg3[%c0_22, %c0_23] : memref<32x32xbf16, #tpu.memory_space<vmem>>, vector<32x32xbf16>
    %cst_24 = arith.constant dense<0.000000e+00> : vector<8x32xf32>
    %89 = tpu.matmul %87, %88, %cst_24 {dimension_numbers = #tpu.dot_dimension_numbers<[1], [0], [0], [1], [0, 0, 1, 1], [], []>} : vector<8x32xbf16>, vector<32x32xbf16>, vector<8x32xf32> -> vector<8x32xf32>
    %90 = vector.broadcast %4 : vector<1x32xf32> to vector<8x32xf32>
    %91 = arith.addf %89, %90 : vector<8x32xf32>
    %92 = arith.addf %1, %91 : vector<8x32xf32>
    %cst_25 = arith.constant dense<0.000000e+00> : vector<8xf32>
    %93 = vector.multi_reduction <add>, %92, %cst_25 [1] : vector<8x32xf32> to vector<8xf32>
    %94 = vector.shape_cast %93 : vector<8xf32> to vector<8x1xf32>
    %cst_26 = arith.constant 3.200000e+01 : f32
    %95 = vector.broadcast %cst_26 : f32 to vector<8x1xf32>
    %96 = arith.divf %94, %95 : vector<8x1xf32>
    %97 = vector.broadcast %96 : vector<8x1xf32> to vector<8x32xf32>
    %98 = arith.subf %92, %97 : vector<8x32xf32>
    %99 = arith.mulf %98, %98 : vector<8x32xf32>
    %cst_27 = arith.constant dense<0.000000e+00> : vector<8xf32>
    %100 = vector.multi_reduction <add>, %99, %cst_27 [1] : vector<8x32xf32> to vector<8xf32>
    %101 = vector.shape_cast %100 : vector<8xf32> to vector<8x1xf32>
    %cst_28 = arith.constant 3.200000e+01 : f32
    %102 = vector.broadcast %cst_28 : f32 to vector<8x1xf32>
    %103 = arith.divf %101, %102 : vector<8x1xf32>
    %104 = vector.broadcast %96 : vector<8x1xf32> to vector<8x32xf32>
    %105 = arith.subf %92, %104 : vector<8x32xf32>
    %cst_29 = arith.constant 9.99999974E-6 : f32
    %106 = vector.broadcast %cst_29 : f32 to vector<8x1xf32>
    %107 = arith.addf %103, %106 : vector<8x1xf32>
    %108 = math.rsqrt %107 : vector<8x1xf32>
    %109 = vector.broadcast %108 : vector<8x1xf32> to vector<8x32xf32>
    %110 = arith.mulf %105, %109 : vector<8x32xf32>
    %111 = vector.broadcast %5 : vector<1x32xf32> to vector<8x32xf32>
    %112 = arith.mulf %110, %111 : vector<8x32xf32>
    %113 = vector.broadcast %6 : vector<1x32xf32> to vector<8x32xf32>
    %114 = arith.addf %112, %113 : vector<8x32xf32>
    %115 = arith.truncf %114 : vector<8x32xf32> to vector<8x32xbf16>
    %c0_30 = arith.constant 0 : index
    %c0_31 = arith.constant 0 : index
    %116 = vector.load %arg4[%c0_30, %c0_31] : memref<32x64xbf16, #tpu.memory_space<vmem>>, vector<32x64xbf16>
    %cst_32 = arith.constant dense<0.000000e+00> : vector<8x64xf32>
    %117 = tpu.matmul %115, %116, %cst_32 {dimension_numbers = #tpu.dot_dimension_numbers<[1], [0], [0], [1], [0, 0, 1, 1], [], []>} : vector<8x32xbf16>, vector<32x64xbf16>, vector<8x64xf32> -> vector<8x64xf32>
    %118 = vector.broadcast %7 : vector<1x64xf32> to vector<8x64xf32>
    %119 = arith.addf %117, %118 : vector<8x64xf32>
    %cst_33 = arith.constant 0.000000e+00 : f32
    %120 = vector.broadcast %cst_33 : f32 to vector<8x64xf32>
    %121 = arith.maximumf %119, %120 : vector<8x64xf32>
    %122 = arith.truncf %121 : vector<8x64xf32> to vector<8x64xbf16>
    %c0_34 = arith.constant 0 : index
    %c0_35 = arith.constant 0 : index
    %123 = vector.load %arg5[%c0_34, %c0_35] : memref<64x32xbf16, #tpu.memory_space<vmem>>, vector<64x32xbf16>
    %cst_36 = arith.constant dense<0.000000e+00> : vector<8x32xf32>
    %124 = tpu.matmul %122, %123, %cst_36 {dimension_numbers = #tpu.dot_dimension_numbers<[1], [0], [0], [1], [0, 0, 1, 1], [], []>} : vector<8x64xbf16>, vector<64x32xbf16>, vector<8x32xf32> -> vector<8x32xf32>
    %125 = vector.broadcast %8 : vector<1x32xf32> to vector<8x32xf32>
    %126 = arith.addf %124, %125 : vector<8x32xf32>
    %127 = arith.addf %114, %126 : vector<8x32xf32>
    %cst_37 = arith.constant dense<0.000000e+00> : vector<8xf32>
    %128 = vector.multi_reduction <add>, %127, %cst_37 [1] : vector<8x32xf32> to vector<8xf32>
    %129 = vector.shape_cast %128 : vector<8xf32> to vector<8x1xf32>
    %cst_38 = arith.constant 3.200000e+01 : f32
    %130 = vector.broadcast %cst_38 : f32 to vector<8x1xf32>
    %131 = arith.divf %129, %130 : vector<8x1xf32>
    %132 = vector.broadcast %131 : vector<8x1xf32> to vector<8x32xf32>
    %133 = arith.subf %127, %132 : vector<8x32xf32>
    %134 = arith.mulf %133, %133 : vector<8x32xf32>
    %cst_39 = arith.constant dense<0.000000e+00> : vector<8xf32>
    %135 = vector.multi_reduction <add>, %134, %cst_39 [1] : vector<8x32xf32> to vector<8xf32>
    %136 = vector.shape_cast %135 : vector<8xf32> to vector<8x1xf32>
    %cst_40 = arith.constant 3.200000e+01 : f32
    %137 = vector.broadcast %cst_40 : f32 to vector<8x1xf32>
    %138 = arith.divf %136, %137 : vector<8x1xf32>
    %139 = vector.broadcast %131 : vector<8x1xf32> to vector<8x32xf32>
    %140 = arith.subf %127, %139 : vector<8x32xf32>
    %cst_41 = arith.constant 9.99999974E-6 : f32
    %141 = vector.broadcast %cst_41 : f32 to vector<8x1xf32>
    %142 = arith.addf %138, %141 : vector<8x1xf32>
    %143 = math.rsqrt %142 : vector<8x1xf32>
    %144 = vector.broadcast %143 : vector<8x1xf32> to vector<8x32xf32>
    %145 = arith.mulf %140, %144 : vector<8x32xf32>
    %146 = vector.broadcast %9 : vector<1x32xf32> to vector<8x32xf32>
    %147 = arith.mulf %145, %146 : vector<8x32xf32>
    %148 = vector.broadcast %10 : vector<1x32xf32> to vector<8x32xf32>
    %149 = arith.addf %147, %148 : vector<8x32xf32>
    %c0_42 = arith.constant 0 : index
    %c0_43 = arith.constant 0 : index
    %c0_44 = arith.constant 0 : index
    %150 = vector.load %arg7[%c0_42, %c0_43, %c0_44] : memref<1x8x32xf32, #tpu.memory_space<vmem>>, vector<1x8x32xf32>
    %151 = vector.shape_cast %150 : vector<1x8x32xf32> to vector<8x32xf32>
    %152 = vector.shape_cast %149 : vector<8x32xf32> to vector<1x8x32xf32>
    tpu.vector_store %arg7[%c0_42, %c0_43, %c0_44], %152 {strides = array<i32>} : memref<1x8x32xf32, #tpu.memory_space<vmem>>, vector<1x8x32xf32>,
    return
  }
  func.func @transform_0(%arg0: i32) -> (i32, i32, i32) {
    %c0_i32 = arith.constant 0 : i32
    %c0_i32_0 = arith.constant 0 : i32
    %c0_i32_1 = arith.constant 0 : i32
    return %arg0, %c0_i32, %c0_i32_0 : i32, i32, i32
  }
  func.func @transform_1(%arg0: i32) -> (i32, i32) {
    %c0_i32 = arith.constant 0 : i32
    %c0_i32_0 = arith.constant 0 : i32
    %c0_i32_1 = arith.constant 0 : i32
    return %c0_i32, %c0_i32_0 : i32, i32
  }
  func.func @transform_2(%arg0: i32) -> (i32, i32) {
    %c0_i32 = arith.constant 0 : i32
    %c0_i32_0 = arith.constant 0 : i32
    %c0_i32_1 = arith.constant 0 : i32
    return %c0_i32, %c0_i32_0 : i32, i32
  }
  func.func @transform_3(%arg0: i32) -> (i32, i32) {
    %c0_i32 = arith.constant 0 : i32
    %c0_i32_0 = arith.constant 0 : i32
    %c0_i32_1 = arith.constant 0 : i32
    return %c0_i32, %c0_i32_0 : i32, i32
  }
  func.func @transform_4(%arg0: i32) -> (i32, i32) {
    %c0_i32 = arith.constant 0 : i32
    %c0_i32_0 = arith.constant 0 : i32
    %c0_i32_1 = arith.constant 0 : i32
    return %c0_i32, %c0_i32_0 : i32, i32
  }
  func.func @transform_5(%arg0: i32) -> (i32, i32) {
    %c0_i32 = arith.constant 0 : i32
    %c0_i32_0 = arith.constant 0 : i32
    %c0_i32_1 = arith.constant 0 : i32
    return %c0_i32, %c0_i32_0 : i32, i32
  }
  func.func @transform_6(%arg0: i32) -> (i32, i32, i32) {
    %c0_i32 = arith.constant 0 : i32
    %c0_i32_0 = arith.constant 0 : i32
    %c0_i32_1 = arith.constant 0 : i32
    return %arg0, %c0_i32, %c0_i32_0 : i32, i32, i32
  }
}

</mosaic_0001>

<llo_original>
// kernel: transformer_block.1
$region0: #{transformer_block.1}
  #allocation0 [shape = 'u32[]', space=smem, size = 0x4, offset = 0x4, fixed_abs, tag = 'smem constant byte address 0x4 - core index']
  #allocation1 [shape = 'u32[144,128]{1,0:T(1,128)}', space=vmem, size = 0x12000, scoped, tag = 'internal scratch']
  %s0 = inlined_call_operand.vmem [shape: f32[2,8,32], index: 0, kind: input, shape index: {}]
  %s1 = inlined_call_operand.vmem [shape: bf16[32,96], index: 1, kind: input, shape index: {}]
  %s2 = inlined_call_operand.vmem [shape: bf16[32,32], index: 2, kind: input, shape index: {}]
  %s3 = inlined_call_operand.vmem [shape: bf16[32,64], index: 3, kind: input, shape index: {}]
  %s4 = inlined_call_operand.vmem [shape: bf16[64,32], index: 4, kind: input, shape index: {}]
  %s5 = inlined_call_operand.vmem [shape: f32[8,128], index: 5, kind: input, shape index: {}]
  %s6 = inlined_call_operand.vmem [shape: f32[2,8,32], index: 6, kind: output, shape index: {}]
  %s7 = sld [smem:[#allocation0]]
  $region57: #{transformer_block.1} parent=0
    _
  %s9 = ssub.s32 1, %s7
  %s10 = scalar_select 0, %s9, %s7
  loop: start=0, step=1, limit=4
  $region2: #{transformer_block.1} parent=0 // loop_pre_header
    _
  $region3: #{transformer_block.1} parent=0 // loop_header
    %s12 = sphi 0, %s16
    %p13 = scmp.ge.s32.totalorder %s12, 4
    %s22 = sphi 0, %s24
    %s25 = sphi 0, %s22
    %s26 = sphi 0, %s25
    %s42 = sphi 0, %s26
    %s46 = sphi 0, %s46
    %s48 = sphi 0, %s46
    %s49 = sphi 0, %s48
    %s63 = sphi 0, %s49
    %s67 = sphi 0, %s67
    %s69 = sphi 0, %s67
    %s70 = sphi 0, %s69
    %s84 = sphi 0, %s70
    %s88 = sphi 0, %s88
    %s90 = sphi 0, %s88
    %s91 = sphi 0, %s90
    %s105 = sphi 0, %s91
    %s109 = sphi 0, %s109
    %s111 = sphi 0, %s109
    %s112 = sphi 0, %s111
    %s126 = sphi 0, %s112
    %s130 = sphi 0, %s130
    %s132 = sphi 0, %s130
    %s133 = sphi 0, %s132
    %s147 = sphi 0, %s133
    %s153 = sphi 0, %s155
    %s156 = sphi 0, %s153
    %s157 = sphi 0, %s156
    %s173 = sphi 0, %s157
  $region4: #{transformer_block.1} parent=0 // loop_header_branch
    %15 = sbr.rel (%p13) target = $region8
  $region5: #{transformer_block.1} parent=0 // loop_body
    %s17 = ssub.s32 %s12, 1
    %s18 = ssub.s32 %s12, 2
    %s19 = sadd.s32 %s12, 1
    %s20 = ssub.s32 %s12, %s19
    %p21 = scmp.eq.s32.totalorder %s20, 0
    %s23 = sadd.s32 %s22, 1
    %s24 = scalar_select %p21, %s22, %s23
    %p27 = pneg %p21
    %p28 = scmp.eq.s32.totalorder %s12, 1
    %p29 = por %p27, %p28
    %p30 = scmp.ne.s32.totalorder %s22, %s25
    %p31 = scmp.eq.s32.totalorder %s12, 0
    %p32 = por %p30, %p31
    %p33 = scmp.ne.s32.totalorder %s22, %s25
    %p34 = scmp.eq.s32.totalorder %s17, 1
    %p35 = por %p33, %p34
    %p36 = scmp.ne.s32.totalorder %s25, %s26
    %p37 = scmp.eq.s32.totalorder %s17, 0
    %p38 = por %p36, %p37
    %p39 = scmp.ne.s32.totalorder %s25, %s26
    %p40 = scmp.eq.s32.totalorder %s18, 1
    %p41 = por %p39, %p40
    %p43 = scmp.ne.s32.totalorder %s26, %s42
    %p44 = scmp.eq.s32.totalorder %s18, 0
    %p45 = por %p43, %p44
    %s47 = sadd.s32 %s46, 1
    %p50 = scmp.eq.s32.totalorder %s12, 1
    %p51 = scmp.ne.s32.totalorder %s46, %s48
    %p52 = scmp.eq.s32.totalorder %s12, 0
    %p53 = por %p51, %p52
    %p54 = scmp.ne.s32.totalorder %s46, %s48
    %p55 = scmp.eq.s32.totalorder %s17, 1
    %p56 = por %p54, %p55
    %p57 = scmp.ne.s32.totalorder %s48, %s49
    %p58 = scmp.eq.s32.totalorder %s17, 0
    %p59 = por %p57, %p58
    %p60 = scmp.ne.s32.totalorder %s48, %s49
    %p61 = scmp.eq.s32.totalorder %s18, 1
    %p62 = por %p60, %p61
    %p64 = scmp.ne.s32.totalorder %s49, %s63
    %p65 = scmp.eq.s32.totalorder %s18, 0
    %p66 = por %p64, %p65
    %s68 = sadd.s32 %s67, 1
    %p71 = scmp.eq.s32.totalorder %s12, 1
    %p72 = scmp.ne.s32.totalorder %s67, %s69
    %p73 = scmp.eq.s32.totalorder %s12, 0
    %p74 = por %p72, %p73
    %p75 = scmp.ne.s32.totalorder %s67, %s69
    %p76 = scmp.eq.s32.totalorder %s17, 1
    %p77 = por %p75, %p76
    %p78 = scmp.ne.s32.totalorder %s69, %s70
    %p79 = scmp.eq.s32.totalorder %s17, 0
    %p80 = por %p78, %p79
    %p81 = scmp.ne.s32.totalorder %s69, %s70
    %p82 = scmp.eq.s32.totalorder %s18, 1
    %p83 = por %p81, %p82
    %p85 = scmp.ne.s32.totalorder %s70, %s84
    %p86 = scmp.eq.s32.totalorder %s18, 0
    %p87 = por %p85, %p86
    %s89 = sadd.s32 %s88, 1
    %p92 = scmp.eq.s32.totalorder %s12, 1
    %p93 = scmp.ne.s32.totalorder %s88, %s90
    %p94 = scmp.eq.s32.totalorder %s12, 0
    %p95 = por %p93, %p94
    %p96 = scmp.ne.s32.totalorder %s88, %s90
    %p97 = scmp.eq.s32.totalorder %s17, 1
    %p98 = por %p96, %p97
    %p99 = scmp.ne.s32.totalorder %s90, %s91
    %p100 = scmp.eq.s32.totalorder %s17, 0
    %p101 = por %p99, %p100
    %p102 = scmp.ne.s32.totalorder %s90, %s91
    %p103 = scmp.eq.s32.totalorder %s18, 1
    %p104 = por %p102, %p103
    %p106 = scmp.ne.s32.totalorder %s91, %s105
    %p107 = scmp.eq.s32.totalorder %s18, 0
    %p108 = por %p106, %p107
    %s110 = sadd.s32 %s109, 1
    %p113 = scmp.eq.s32.totalorder %s12, 1
    %p114 = scmp.ne.s32.totalorder %s109, %s111
    %p115 = scmp.eq.s32.totalorder %s12, 0
    %p116 = por %p114, %p115
    %p117 = scmp.ne.s32.totalorder %s109, %s111
    %p118 = scmp.eq.s32.totalorder %s17, 1
    %p119 = por %p117, %p118
    %p120 = scmp.ne.s32.totalorder %s111, %s112
    %p121 = scmp.eq.s32.totalorder %s17, 0
    %p122 = por %p120, %p121
    %p123 = scmp.ne.s32.totalorder %s111, %s112
    %p124 = scmp.eq.s32.totalorder %s18, 1
    %p125 = por %p123, %p124
    %p127 = scmp.ne.s32.totalorder %s112, %s126
    %p128 = scmp.eq.s32.totalorder %s18, 0
    %p129 = por %p127, %p128
    %s131 = sadd.s32 %s130, 1
    %p134 = scmp.eq.s32.totalorder %s12, 1
    %p135 = scmp.ne.s32.totalorder %s130, %s132
    %p136 = scmp.eq.s32.totalorder %s12, 0
    %p137 = por %p135, %p136
    %p138 = scmp.ne.s32.totalorder %s130, %s132
    %p139 = scmp.eq.s32.totalorder %s17, 1
    %p140 = por %p138, %p139
    %p141 = scmp.ne.s32.totalorder %s132, %s133
    %p142 = scmp.eq.s32.totalorder %s17, 0
    %p143 = por %p141, %p142
    %p144 = scmp.ne.s32.totalorder %s132, %s133
    %p145 = scmp.eq.s32.totalorder %s18, 1
    %p146 = por %p144, %p145
    %p148 = scmp.ne.s32.totalorder %s133, %s147
    %p149 = scmp.eq.s32.totalorder %s18, 0
    %p150 = por %p148, %p149
    %s151 = ssub.s32 %s12, %s19
    %p152 = scmp.eq.s32.totalorder %s151, 0
    %s154 = sadd.s32 %s153, 1
    %s155 = scalar_select %p152, %s153, %s154
    %p158 = pneg %p152
    %p159 = scmp.eq.s32.totalorder %s12, 1
    %p160 = por %p158, %p159
    %p161 = scmp.ne.s32.totalorder %s153, %s156
    %p162 = scmp.eq.s32.totalorder %s12, 0
    %p163 = por %p161, %p162
    %p164 = scmp.ne.s32.totalorder %s153, %s156
    %p165 = scmp.eq.s32.totalorder %s17, 1
    %p166 = por %p164, %p165
    %p167 = scmp.ne.s32.totalorder %s156, %s157
    %p168 = scmp.eq.s32.totalorder %s17, 0
    %p169 = por %p167, %p168
    %p170 = scmp.ne.s32.totalorder %s156, %s157
    %p171 = scmp.eq.s32.totalorder %s18, 1
    %p172 = por %p170, %p171
    %p174 = scmp.ne.s32.totalorder %s157, %s173
    %p175 = scmp.eq.s32.totalorder %s18, 0
    %p176 = por %p174, %p175
    %p177 = scmp.le.s32.totalorder 1, %s12
    %p178 = scmp.lt.s32.totalorder %s12, 3
    %p179 = pnand %p177, %p178
    %p180 = pneg %p179
    // Predicated region
    $region9: #{transformer_block.1} parent=5 // pred_check
      _
    $region10: #{transformer_block.1} parent=5 // pred_check_branch
      %182 = sbr.rel (%p179) target = $region12
    $region11: #{transformer_block.1} parent=5 // pred_region
      %s183 = ssub.s32 %s12, 1
      // Predicated region
      $region13: #{transformer_block.1} parent=11 // pred_check
        %p184 = pneg %p59
      $region14: #{transformer_block.1} parent=11 // pred_check_branch
        %186 = sbr.rel (%p184) target = $region16
      $region15: #{transformer_block.1} parent=11 // pred_region
        _
      $region16: #{transformer_block.1} parent=11 // pred_fallthru
        _
      // Predicated region
      $region17: #{transformer_block.1} parent=11 // pred_check
        %p187 = pneg %p80
      $region18: #{transformer_block.1} parent=11 // pred_check_branch
        %189 = sbr.rel (%p187) target = $region20
      $region19: #{transformer_block.1} parent=11 // pred_region
        _
      $region20: #{transformer_block.1} parent=11 // pred_fallthru
        _
      // Predicated region
      $region21: #{transformer_block.1} parent=11 // pred_check
        %p190 = pneg %p101
      $region22: #{transformer_block.1} parent=11 // pred_check_branch
        %192 = sbr.rel (%p190) target = $region24
      $region23: #{transformer_block.1} parent=11 // pred_region
        _
      $region24: #{transformer_block.1} parent=11 // pred_fallthru
        _
      // Predicated region
      $region25: #{transformer_block.1} parent=11 // pred_check
        %p193 = pneg %p122
      $region26: #{transformer_block.1} parent=11 // pred_check_branch
        %195 = sbr.rel (%p193) target = $region28
      $region27: #{transformer_block.1} parent=11 // pred_region
        _
      $region28: #{transformer_block.1} parent=11 // pred_fallthru
        _
      // Predicated region
      $region29: #{transformer_block.1} parent=11 // pred_check
        %p196 = pneg %p143
      $region30: #{transformer_block.1} parent=11 // pred_check_branch
        %198 = sbr.rel (%p196) target = $region32
      $region31: #{transformer_block.1} parent=11 // pred_region
        _
      $region32: #{transformer_block.1} parent=11 // pred_fallthru
        _
    $region12: #{transformer_block.1} parent=5 // pred_fallthru
      _
    %p199 = scmp.lt.s32.totalorder %s12, 2
    // Predicated region
    $region33: #{transformer_block.1} parent=5 // pred_check
      %p200 = pneg %p199
    $region34: #{transformer_block.1} parent=5 // pred_check_branch
      %202 = sbr.rel (%p200) target = $region36
    $region35: #{transformer_block.1} parent=5 // pred_region
      // Predicated region
      $region37: #{transformer_block.1} parent=35 // pred_check
        %p203 = pneg %p32
      $region38: #{transformer_block.1} parent=35 // pred_check_branch
        %205 = sbr.rel (%p203) target = $region40
      $region39: #{transformer_block.1} parent=35 // pred_region
        %p206 = scmp.lt.s32.totalorder %s12, 1
        %s207 = scalar_select %p206, %s12, 1
        %s208 = smul.addr %s207, 8
        %s209 = scalar_lea.vmem %s0, %s208
      $region40: #{transformer_block.1} parent=35 // pred_fallthru
        _
    $region36: #{transformer_block.1} parent=5 // pred_fallthru
      _
    %p210 = scmp.le.s32.totalorder 1, %s12
    %p211 = scmp.lt.s32.totalorder %s12, 3
    %p212 = pnand %p210, %p211
    %p213 = pneg %p212
    // Predicated region
    $region41: #{transformer_block.1} parent=5 // pred_check
      _
    $region42: #{transformer_block.1} parent=5 // pred_check_branch
      %215 = sbr.rel (%p212) target = $region44
    $region43: #{transformer_block.1} parent=5 // pred_region
      %s216 = ssub.s32 %s12, 1
      %p217 = scmp.lt.s32.totalorder %s17, 1
      %s218 = scalar_select %p217, %s17, 1
      %s219 = smul.addr %s218, 8
      %s220 = scalar_lea.vmem %s0, %s219
      %p221 = pneg %p38
      %p222 = pneg %p35
      %p223 = pneg %p59
      %p224 = pneg %p56
      %p225 = pneg %p80
      %p226 = pneg %p77
      %p227 = pneg %p101
      %p228 = pneg %p98
      %p229 = pneg %p122
      %p230 = pneg %p119
      %p231 = pneg %p143
      %p232 = pneg %p140
      %p233 = pneg %p169
      %p234 = pneg %p166
      %p235 = scmp.lt.s32.totalorder %s17, 1
      %s236 = scalar_select %p235, %s17, 1
      %s237 = smul.addr %s236, 8
      %s238 = scalar_lea.vmem %s6, %s237
      %p239 = scmp.lt.s32.totalorder %s17, 1
      %s240 = scalar_select %p239, %s17, 1
      %s241 = smul.addr %s240, 8
      %s242 = scalar_lea.vmem %s0, %s241
      %p243 = scmp.lt.s32.totalorder %s17, 1
      %s244 = scalar_select %p243, %s17, 1
      %s245 = smul.addr %s244, 8
      %s246 = scalar_lea.vmem %s6, %s245
      %v248 = vld [vmem:[%s242] sm:$0xff]
      %v249 = vld [vmem:[%s5] sm:$0xff]
      %v250 = vpack.c.bf16 %v248, %v248
      %v251 = vld [vmem:[%s1] sm:$0xf]
      %v252 = vld [vmem:[%s1 + $0x4] sm:$0xf]
      %v253 = vld [vmem:[%s1 + $0x8] sm:$0xf]
      %v254 = vld [vmem:[%s1 + $0xc] sm:$0xf]
      %v255 = vlaneseq
      %v256 = vshrl.u32 %v255, 7
      %v257 = vsub.s32 0, %v256
      %v258 = vrot.slane %v249, %v257
      %v263 = vunpack.c.l.b16 %v251
      %v264 = vunpack.c.l.b16 %v252
      %v265 = vunpack.c.l.b16 %v253
      %v266 = vunpack.c.l.b16 %v254
      %v267 = vpack.c.b16 %v264, %v263
      %v268 = vpack.c.b16 %v266, %v265
      %vm271 = vcmask 261120
      %v273 = vsel %vm271, %v250, 0
      %275 = vmatprep.subr.bf16.mxu0 0
      %276 = vmatpush1.bf16.msra.mxu0 %v267
      %277 = vmatprep.subr.bf16.mxu0 0
      %278 = vmatpush1.bf16.msra.mxu0 %v268
      %279 = vmatprep.subr.bf16.mxu0 0
      %280 = vmatpush1.bf16.msra.mxu0 0
      %281 = vmatprep.subr.bf16.mxu0 0
      %282 = vmatpush1.bf16.msra.mxu0 0
      %283 = vmatprep.subr.bf16.mxu0 0
      %284 = vmatpush1.bf16.msra.mxu0 0
      %285 = vmatprep.subr.bf16.mxu0 0
      %286 = vmatpush1.bf16.msra.mxu0 0
      %287 = vmatprep.subr.bf16.mxu0 0
      %288 = vmatpush1.bf16.msra.mxu0 0
      %289 = vmatprep.subr.bf16.mxu0 0
      %290 = vmatpush1.bf16.msra.mxu0 0
      %291 = vmatprep.subr.bf16.mxu0 0
      %292 = vmatpush1.bf16.msra.mxu0 0
      %293 = vmatprep.subr.bf16.mxu0 0
      %294 = vmatpush1.bf16.msra.mxu0 0
      %295 = vmatprep.subr.bf16.mxu0 0
      %296 = vmatpush1.bf16.msra.mxu0 0
      %297 = vmatprep.subr.bf16.mxu0 0
      %298 = vmatpush1.bf16.msra.mxu0 0
      %299 = vmatprep.subr.bf16.mxu0 0
      %300 = vmatpush1.bf16.msra.mxu0 0
      %301 = vmatprep.subr.bf16.mxu0 0
      %302 = vmatpush1.bf16.msra.mxu0 0
      %303 = vmatprep.subr.bf16.mxu0 0
      %304 = vmatpush1.bf16.msra.mxu0 0
      %305 = vmatprep.subr.bf16.mxu0 0
      %306 = vmatpush1.bf16.msra.mxu0 0
      %307 = vmatprep.mubr.bf16.mxu0 0
      %308 = vmatmul.mubr.bf16.gmra.mrb[0].mxu0 %v273
      %v309 = vpop.f32.mrb[0].mxu0
      %v310 = vadd.f32 %v258, %v309
      %v311 = vpop.f32.mrb[0].mxu0
      %v312 = vpop.f32.mrb[0].mxu0
      %v313 = vpop.f32.mrb[0].mxu0
      %314 = vdwg.mxu0
      %v315 = vpack.c.bf16 %v310, %v310
      %317 = vrot.lane.b32.xlu0 %v315, 96
      %v318 = vpop.permute.xlu0 %317
      %vm319 = vcmask 64512
      %v321 = vsel %vm319, %v315, 0
      %v324 = vsel %vm319, %v318, 0
      %326 = vmatprep.subr.bf16.mxu0 0
      %327 = vmatpush1.bf16.xpose.msra.mxu0 %v324
      %328 = vmatprep.subr.bf16.mxu0 0
      %329 = vmatpush1.bf16.xpose.msra.mxu0 0
      %330 = vmatprep.subr.bf16.mxu0 0
      %331 = vmatpush1.bf16.xpose.msra.mxu0 0
      %332 = vmatprep.subr.bf16.mxu0 0
      %333 = vmatpush1.bf16.xpose.msra.mxu0 0
      %334 = vmatprep.subr.bf16.mxu0 0
      %335 = vmatpush1.bf16.xpose.msra.mxu0 0
      %336 = vmatprep.subr.bf16.mxu0 0
      %337 = vmatpush1.bf16.xpose.msra.mxu0 0
      %338 = vmatprep.subr.bf16.mxu0 0
      %339 = vmatpush1.bf16.xpose.msra.mxu0 0
      %340 = vmatprep.subr.bf16.mxu0 0
      %341 = vmatpush1.bf16.xpose.msra.mxu0 0
      %342 = vmatprep.subr.bf16.mxu0 0
      %343 = vmatpush1.bf16.xpose.msra.mxu0 0
      %344 = vmatprep.subr.bf16.mxu0 0
      %345 = vmatpush1.bf16.xpose.msra.mxu0 0
      %346 = vmatprep.subr.bf16.mxu0 0
      %347 = vmatpush1.bf16.xpose.msra.mxu0 0
      %348 = vmatprep.subr.bf16.mxu0 0
      %349 = vmatpush1.bf16.xpose.msra.mxu0 0
      %350 = vmatprep.subr.bf16.mxu0 0
      %351 = vmatpush1.bf16.xpose.msra.mxu0 0
      %352 = vmatprep.subr.bf16.mxu0 0
      %353 = vmatpush1.bf16.xpose.msra.mxu0 0
      %354 = vmatprep.subr.bf16.mxu0 0
      %355 = vmatpush1.bf16.xpose.msra.mxu0 0
      %356 = vmatprep.subr.bf16.mxu0 0
      %357 = vmatpush1.bf16.xpose.msra.mxu0 0
      %358 = vmatprep.mubr.bf16.mxu0 0
      %359 = vmatmul.mubr.bf16.gmra.mrb[0].mxu0 %v321
      %v360 = vpop.f32.mrb[0].mxu0
      %v361 = vadd.f32 0.0, %v360
      %v362 = vpop.f32.mrb[0].mxu0
      %v363 = vpop.f32.mrb[0].mxu0
      %v364 = vpop.f32.mrb[0].mxu0
      %365 = vdwg.mxu0
      %v366 = vsel %vm319, %v361, -inf
      %367 = vmax.xlane.f32.xlu0 %v366
      %v368 = vpop.xlane.xlu0 %367
      %v369 = vsub.f32 %v361, %v368
      %v370 = vmul.f32 %v369, 1.442695
      %v371 = vpow.pop %v370
      %v372 = vsel %vm319, %v371, 0.0
      %373 = vadd.xlane.f32.xlu0 %v372
      %v374 = vpop.xlane.xlu0 %373
      %v375 = vrcp.pop %v374
      %v376 = vmul.f32 %v371, %v375
      %v377 = vpack.c.bf16 %v376, %v376
      %378 = vrot.lane.b32.xlu0 %v315, 64
      %v379 = vpop.permute.xlu0 %378
      %v381 = vsel %vm319, %v377, 0
      %vm383 = vcmask 1043456
      %v385 = vsel %vm383, %v379, 0
      %387 = vmatprep.subr.bf16.mxu0 0
      %388 = vmatpush1.bf16.msra.mxu0 %v385
      %389 = vmatprep.subr.bf16.mxu0 0
      %390 = vmatpush1.bf16.msra.mxu0 0
      %391 = vmatprep.subr.bf16.mxu0 0
      %392 = vmatpush1.bf16.msra.mxu0 0
      %393 = vmatprep.subr.bf16.mxu0 0
      %394 = vmatpush1.bf16.msra.mxu0 0
      %395 = vmatprep.subr.bf16.mxu0 0
      %396 = vmatpush1.bf16.msra.mxu0 0
      %397 = vmatprep.subr.bf16.mxu0 0
      %398 = vmatpush1.bf16.msra.mxu0 0
      %399 = vmatprep.subr.bf16.mxu0 0
      %400 = vmatpush1.bf16.msra.mxu0 0
      %401 = vmatprep.subr.bf16.mxu0 0
      %402 = vmatpush1.bf16.msra.mxu0 0
      %403 = vmatprep.subr.bf16.mxu0 0
      %404 = vmatpush1.bf16.msra.mxu0 0
      %405 = vmatprep.subr.bf16.mxu0 0
      %406 = vmatpush1.bf16.msra.mxu0 0
      %407 = vmatprep.subr.bf16.mxu0 0
      %408 = vmatpush1.bf16.msra.mxu0 0
      %409 = vmatprep.subr.bf16.mxu0 0
      %410 = vmatpush1.bf16.msra.mxu0 0
      %411 = vmatprep.subr.bf16.mxu0 0
      %412 = vmatpush1.bf16.msra.mxu0 0
      %413 = vmatprep.subr.bf16.mxu0 0
      %414 = vmatpush1.bf16.msra.mxu0 0
      %415 = vmatprep.subr.bf16.mxu0 0
      %416 = vmatpush1.bf16.msra.mxu0 0
      %417 = vmatprep.subr.bf16.mxu0 0
      %418 = vmatpush1.bf16.msra.mxu0 0
      %419 = vmatprep.mubr.bf16.mxu0 0
      %420 = vmatmul.mubr.bf16.gmra.mrb[0].mxu0 %v381
      %v421 = vpop.f32.mrb[0].mxu0
      %v422 = vadd.f32 0.0, %v421
      %v423 = vpop.f32.mrb[0].mxu0
      %v424 = vpop.f32.mrb[0].mxu0
      %v425 = vpop.f32.mrb[0].mxu0
      %426 = vdwg.mxu0
      %427 = vrot.lane.b32.xlu0 %v315, 120
      %v428 = vpop.permute.xlu0 %427
      %429 = vrot.lane.b32.xlu0 %v315, 88
      %v430 = vpop.permute.xlu0 %429
      %v432 = vsel %vm319, %v428, 0
      %v435 = vsel %vm319, %v430, 0
      %437 = vmatprep.subr.bf16.mxu0 0
      %438 = vmatpush1.bf16.xpose.msra.mxu0 %v435
      %439 = vmatprep.subr.bf16.mxu0 0
      %440 = vmatpush1.bf16.xpose.msra.mxu0 0
      %441 = vmatprep.subr.bf16.mxu0 0
      %442 = vmatpush1.bf16.xpose.msra.mxu0 0
      %443 = vmatprep.subr.bf16.mxu0 0
      %444 = vmatpush1.bf16.xpose.msra.mxu0 0
      %445 = vmatprep.subr.bf16.mxu0 0
      %446 = vmatpush1.bf16.xpose.msra.mxu0 0
      %447 = vmatprep.subr.bf16.mxu0 0
      %448 = vmatpush1.bf16.xpose.msra.mxu0 0
      %449 = vmatprep.subr.bf16.mxu0 0
      %450 = vmatpush1.bf16.xpose.msra.mxu0 0
      %451 = vmatprep.subr.bf16.mxu0 0
      %452 = vmatpush1.bf16.xpose.msra.mxu0 0
      %453 = vmatprep.subr.bf16.mxu0 0
      %454 = vmatpush1.bf16.xpose.msra.mxu0 0
      %455 = vmatprep.subr.bf16.mxu0 0
      %456 = vmatpush1.bf16.xpose.msra.mxu0 0
      %457 = vmatprep.subr.bf16.mxu0 0
      %458 = vmatpush1.bf16.xpose.msra.mxu0 0
      %459 = vmatprep.subr.bf16.mxu0 0
      %460 = vmatpush1.bf16.xpose.msra.mxu0 0
      %461 = vmatprep.subr.bf16.mxu0 0
      %462 = vmatpush1.bf16.xpose.msra.mxu0 0
      %463 = vmatprep.subr.bf16.mxu0 0
      %464 = vmatpush1.bf16.xpose.msra.mxu0 0
      %465 = vmatprep.subr.bf16.mxu0 0
      %466 = vmatpush1.bf16.xpose.msra.mxu0 0
      %467 = vmatprep.subr.bf16.mxu0 0
      %468 = vmatpush1.bf16.xpose.msra.mxu0 0
      %469 = vmatprep.mubr.bf16.mxu0 0
      %470 = vmatmul.mubr.bf16.gmra.mrb[0].mxu0 %v432
      %v471 = vpop.f32.mrb[0].mxu0
      %v472 = vadd.f32 0.0, %v471
      %v473 = vpop.f32.mrb[0].mxu0
      %v474 = vpop.f32.mrb[0].mxu0
      %v475 = vpop.f32.mrb[0].mxu0
      %476 = vdwg.mxu0
      %v477 = vsel %vm319, %v472, -inf
      %478 = vmax.xlane.f32.xlu0 %v477
      %v479 = vpop.xlane.xlu0 %478
      %v480 = vsub.f32 %v472, %v479
      %v481 = vmul.f32 %v480, 1.442695
      %v482 = vpow.pop %v481
      %v483 = vsel %vm319, %v482, 0.0
      %484 = vadd.xlane.f32.xlu0 %v483
      %v485 = vpop.xlane.xlu0 %484
      %v486 = vrcp.pop %v485
      %v487 = vmul.f32 %v482, %v486
      %v488 = vpack.c.bf16 %v487, %v487
      %489 = vrot.lane.b32.xlu0 %v315, 56
      %v490 = vpop.permute.xlu0 %489
      %v492 = vsel %vm319, %v488, 0
      %v495 = vsel %vm383, %v490, 0
      %497 = vmatprep.subr.bf16.mxu0 0
      %498 = vmatpush1.bf16.msra.mxu0 %v495
      %499 = vmatprep.subr.bf16.mxu0 0
      %500 = vmatpush1.bf16.msra.mxu0 0
      %501 = vmatprep.subr.bf16.mxu0 0
      %502 = vmatpush1.bf16.msra.mxu0 0
      %503 = vmatprep.subr.bf16.mxu0 0
      %504 = vmatpush1.bf16.msra.mxu0 0
      %505 = vmatprep.subr.bf16.mxu0 0
      %506 = vmatpush1.bf16.msra.mxu0 0
      %507 = vmatprep.subr.bf16.mxu0 0
      %508 = vmatpush1.bf16.msra.mxu0 0
      %509 = vmatprep.subr.bf16.mxu0 0
      %510 = vmatpush1.bf16.msra.mxu0 0
      %511 = vmatprep.subr.bf16.mxu0 0
      %512 = vmatpush1.bf16.msra.mxu0 0
      %513 = vmatprep.subr.bf16.mxu0 0
      %514 = vmatpush1.bf16.msra.mxu0 0
      %515 = vmatprep.subr.bf16.mxu0 0
      %516 = vmatpush1.bf16.msra.mxu0 0
      %517 = vmatprep.subr.bf16.mxu0 0
      %518 = vmatpush1.bf16.msra.mxu0 0
      %519 = vmatprep.subr.bf16.mxu0 0
      %520 = vmatpush1.bf16.msra.mxu0 0
      %521 = vmatprep.subr.bf16.mxu0 0
      %522 = vmatpush1.bf16.msra.mxu0 0
      %523 = vmatprep.subr.bf16.mxu0 0
      %524 = vmatpush1.bf16.msra.mxu0 0
      %525 = vmatprep.subr.bf16.mxu0 0
      %526 = vmatpush1.bf16.msra.mxu0 0
      %527 = vmatprep.subr.bf16.mxu0 0
      %528 = vmatpush1.bf16.msra.mxu0 0
      %529 = vmatprep.mubr.bf16.mxu0 0
      %530 = vmatmul.mubr.bf16.gmra.mrb[0].mxu0 %v492
      %v531 = vpop.f32.mrb[0].mxu0
      %v532 = vadd.f32 0.0, %v531
      %v533 = vpop.f32.mrb[0].mxu0
      %v534 = vpop.f32.mrb[0].mxu0
      %v535 = vpop.f32.mrb[0].mxu0
      %536 = vdwg.mxu0
      %537 = vrot.lane.b32.xlu0 %v315, 112
      %v538 = vpop.permute.xlu0 %537
      %539 = vrot.lane.b32.xlu0 %v315, 80
      %v540 = vpop.permute.xlu0 %539
      %v542 = vsel %vm319, %v538, 0
      %v545 = vsel %vm319, %v540, 0
      %547 = vmatprep.subr.bf16.mxu0 0
      %548 = vmatpush1.bf16.xpose.msra.mxu0 %v545
      %549 = vmatprep.subr.bf16.mxu0 0
      %550 = vmatpush1.bf16.xpose.msra.mxu0 0
      %551 = vmatprep.subr.bf16.mxu0 0
      %552 = vmatpush1.bf16.xpose.msra.mxu0 0
      %553 = vmatprep.subr.bf16.mxu0 0
      %554 = vmatpush1.bf16.xpose.msra.mxu0 0
      %555 = vmatprep.subr.bf16.mxu0 0
      %556 = vmatpush1.bf16.xpose.msra.mxu0 0
      %557 = vmatprep.subr.bf16.mxu0 0
      %558 = vmatpush1.bf16.xpose.msra.mxu0 0
      %559 = vmatprep.subr.bf16.mxu0 0
      %560 = vmatpush1.bf16.xpose.msra.mxu0 0
      %561 = vmatprep.subr.bf16.mxu0 0
      %562 = vmatpush1.bf16.xpose.msra.mxu0 0
      %563 = vmatprep.subr.bf16.mxu0 0
      %564 = vmatpush1.bf16.xpose.msra.mxu0 0
      %565 = vmatprep.subr.bf16.mxu0 0
      %566 = vmatpush1.bf16.xpose.msra.mxu0 0
      %567 = vmatprep.subr.bf16.mxu0 0
      %568 = vmatpush1.bf16.xpose.msra.mxu0 0
      %569 = vmatprep.subr.bf16.mxu0 0
      %570 = vmatpush1.bf16.xpose.msra.mxu0 0
      %571 = vmatprep.subr.bf16.mxu0 0
      %572 = vmatpush1.bf16.xpose.msra.mxu0 0
      %573 = vmatprep.subr.bf16.mxu0 0
      %574 = vmatpush1.bf16.xpose.msra.mxu0 0
      %575 = vmatprep.subr.bf16.mxu0 0
      %576 = vmatpush1.bf16.xpose.msra.mxu0 0
      %577 = vmatprep.subr.bf16.mxu0 0
      %578 = vmatpush1.bf16.xpose.msra.mxu0 0
      %579 = vmatprep.mubr.bf16.mxu0 0
      %580 = vmatmul.mubr.bf16.gmra.mrb[0].mxu0 %v542
      %v581 = vpop.f32.mrb[0].mxu0
      %v582 = vadd.f32 0.0, %v581
      %v583 = vpop.f32.mrb[0].mxu0
      %v584 = vpop.f32.mrb[0].mxu0
      %v585 = vpop.f32.mrb[0].mxu0
      %586 = vdwg.mxu0
      %v587 = vsel %vm319, %v582, -inf
      %588 = vmax.xlane.f32.xlu0 %v587
      %v589 = vpop.xlane.xlu0 %588
      %v590 = vsub.f32 %v582, %v589
      %v591 = vmul.f32 %v590, 1.442695
      %v592 = vpow.pop %v591
      %v593 = vsel %vm319, %v592, 0.0
      %594 = vadd.xlane.f32.xlu0 %v593
      %v595 = vpop.xlane.xlu0 %594
      %v596 = vrcp.pop %v595
      %v597 = vmul.f32 %v592, %v596
      %v598 = vpack.c.bf16 %v597, %v597
      %599 = vrot.lane.b32.xlu0 %v315, 48
      %v600 = vpop.permute.xlu0 %599
      %v602 = vsel %vm319, %v598, 0
      %v605 = vsel %vm383, %v600, 0
      %607 = vmatprep.subr.bf16.mxu0 0
      %608 = vmatpush1.bf16.msra.mxu0 %v605
      %609 = vmatprep.subr.bf16.mxu0 0
      %610 = vmatpush1.bf16.msra.mxu0 0
      %611 = vmatprep.subr.bf16.mxu0 0
      %612 = vmatpush1.bf16.msra.mxu0 0
      %613 = vmatprep.subr.bf16.mxu0 0
      %614 = vmatpush1.bf16.msra.mxu0 0
      %615 = vmatprep.subr.bf16.mxu0 0
      %616 = vmatpush1.bf16.msra.mxu0 0
      %617 = vmatprep.subr.bf16.mxu0 0
      %618 = vmatpush1.bf16.msra.mxu0 0
      %619 = vmatprep.subr.bf16.mxu0 0
      %620 = vmatpush1.bf16.msra.mxu0 0
      %621 = vmatprep.subr.bf16.mxu0 0
      %622 = vmatpush1.bf16.msra.mxu0 0
      %623 = vmatprep.subr.bf16.mxu0 0
      %624 = vmatpush1.bf16.msra.mxu0 0
      %625 = vmatprep.subr.bf16.mxu0 0
      %626 = vmatpush1.bf16.msra.mxu0 0
      %627 = vmatprep.subr.bf16.mxu0 0
      %628 = vmatpush1.bf16.msra.mxu0 0
      %629 = vmatprep.subr.bf16.mxu0 0
      %630 = vmatpush1.bf16.msra.mxu0 0
      %631 = vmatprep.subr.bf16.mxu0 0
      %632 = vmatpush1.bf16.msra.mxu0 0
      %633 = vmatprep.subr.bf16.mxu0 0
      %634 = vmatpush1.bf16.msra.mxu0 0
      %635 = vmatprep.subr.bf16.mxu0 0
      %636 = vmatpush1.bf16.msra.mxu0 0
      %637 = vmatprep.subr.bf16.mxu0 0
      %638 = vmatpush1.bf16.msra.mxu0 0
      %639 = vmatprep.mubr.bf16.mxu0 0
      %640 = vmatmul.mubr.bf16.gmra.mrb[0].mxu0 %v602
      %v641 = vpop.f32.mrb[0].mxu0
      %v642 = vadd.f32 0.0, %v641
      %v643 = vpop.f32.mrb[0].mxu0
      %v644 = vpop.f32.mrb[0].mxu0
      %v645 = vpop.f32.mrb[0].mxu0
      %646 = vdwg.mxu0
      %647 = vrot.lane.b32.xlu0 %v315, 104
      %v648 = vpop.permute.xlu0 %647
      %649 = vrot.lane.b32.xlu0 %v315, 72
      %v650 = vpop.permute.xlu0 %649
      %v652 = vsel %vm319, %v648, 0
      %v655 = vsel %vm319, %v650, 0
      %657 = vmatprep.subr.bf16.mxu0 0
      %658 = vmatpush1.bf16.xpose.msra.mxu0 %v655
      %659 = vmatprep.subr.bf16.mxu0 0
      %660 = vmatpush1.bf16.xpose.msra.mxu0 0
      %661 = vmatprep.subr.bf16.mxu0 0
      %662 = vmatpush1.bf16.xpose.msra.mxu0 0
      %663 = vmatprep.subr.bf16.mxu0 0
      %664 = vmatpush1.bf16.xpose.msra.mxu0 0
      %665 = vmatprep.subr.bf16.mxu0 0
      %666 = vmatpush1.bf16.xpose.msra.mxu0 0
      %667 = vmatprep.subr.bf16.mxu0 0
      %668 = vmatpush1.bf16.xpose.msra.mxu0 0
      %669 = vmatprep.subr.bf16.mxu0 0
      %670 = vmatpush1.bf16.xpose.msra.mxu0 0
      %671 = vmatprep.subr.bf16.mxu0 0
      %672 = vmatpush1.bf16.xpose.msra.mxu0 0
      %673 = vmatprep.subr.bf16.mxu0 0
      %674 = vmatpush1.bf16.xpose.msra.mxu0 0
      %675 = vmatprep.subr.bf16.mxu0 0
      %676 = vmatpush1.bf16.xpose.msra.mxu0 0
      %677 = vmatprep.subr.bf16.mxu0 0
      %678 = vmatpush1.bf16.xpose.msra.mxu0 0
      %679 = vmatprep.subr.bf16.mxu0 0
      %680 = vmatpush1.bf16.xpose.msra.mxu0 0
      %681 = vmatprep.subr.bf16.mxu0 0
      %682 = vmatpush1.bf16.xpose.msra.mxu0 0
      %683 = vmatprep.subr.bf16.mxu0 0
      %684 = vmatpush1.bf16.xpose.msra.mxu0 0
      %685 = vmatprep.subr.bf16.mxu0 0
      %686 = vmatpush1.bf16.xpose.msra.mxu0 0
      %687 = vmatprep.subr.bf16.mxu0 0
      %688 = vmatpush1.bf16.xpose.msra.mxu0 0
      %689 = vmatprep.mubr.bf16.mxu0 0
      %690 = vmatmul.mubr.bf16.gmra.mrb[0].mxu0 %v652
      %v691 = vpop.f32.mrb[0].mxu0
      %v692 = vadd.f32 0.0, %v691
      %v693 = vpop.f32.mrb[0].mxu0
      %v694 = vpop.f32.mrb[0].mxu0
      %v695 = vpop.f32.mrb[0].mxu0
      %696 = vdwg.mxu0
      %v697 = vsel %vm319, %v692, -inf
      %698 = vmax.xlane.f32.xlu0 %v697
      %v699 = vpop.xlane.xlu0 %698
      %v700 = vsub.f32 %v692, %v699
      %v701 = vmul.f32 %v700, 1.442695
      %v702 = vpow.pop %v701
      %v703 = vsel %vm319, %v702, 0.0
      %704 = vadd.xlane.f32.xlu0 %v703
      %v705 = vpop.xlane.xlu0 %704
      %v706 = vrcp.pop %v705
      %v707 = vmul.f32 %v702, %v706
      %v708 = vpack.c.bf16 %v707, %v707
      %709 = vrot.lane.b32.xlu0 %v315, 40
      %v710 = vpop.permute.xlu0 %709
      %v712 = vsel %vm319, %v708, 0
      %v715 = vsel %vm383, %v710, 0
      %717 = vmatprep.subr.bf16.mxu0 0
      %718 = vmatpush1.bf16.msra.mxu0 %v715
      %719 = vmatprep.subr.bf16.mxu0 0
      %720 = vmatpush1.bf16.msra.mxu0 0
      %721 = vmatprep.subr.bf16.mxu0 0
      %722 = vmatpush1.bf16.msra.mxu0 0
      %723 = vmatprep.subr.bf16.mxu0 0
      %724 = vmatpush1.bf16.msra.mxu0 0
      %725 = vmatprep.subr.bf16.mxu0 0
      %726 = vmatpush1.bf16.msra.mxu0 0
      %727 = vmatprep.subr.bf16.mxu0 0
      %728 = vmatpush1.bf16.msra.mxu0 0
      %729 = vmatprep.subr.bf16.mxu0 0
      %730 = vmatpush1.bf16.msra.mxu0 0
      %731 = vmatprep.subr.bf16.mxu0 0
      %732 = vmatpush1.bf16.msra.mxu0 0
      %733 = vmatprep.subr.bf16.mxu0 0
      %734 = vmatpush1.bf16.msra.mxu0 0
      %735 = vmatprep.subr.bf16.mxu0 0
      %736 = vmatpush1.bf16.msra.mxu0 0
      %737 = vmatprep.subr.bf16.mxu0 0
      %738 = vmatpush1.bf16.msra.mxu0 0
      %739 = vmatprep.subr.bf16.mxu0 0
      %740 = vmatpush1.bf16.msra.mxu0 0
      %741 = vmatprep.subr.bf16.mxu0 0
      %742 = vmatpush1.bf16.msra.mxu0 0
      %743 = vmatprep.subr.bf16.mxu0 0
      %744 = vmatpush1.bf16.msra.mxu0 0
      %745 = vmatprep.subr.bf16.mxu0 0
      %746 = vmatpush1.bf16.msra.mxu0 0
      %747 = vmatprep.subr.bf16.mxu0 0
      %748 = vmatpush1.bf16.msra.mxu0 0
      %749 = vmatprep.mubr.bf16.mxu0 0
      %750 = vmatmul.mubr.bf16.gmra.mrb[0].mxu0 %v712
      %v751 = vpop.f32.mrb[0].mxu0
      %v752 = vadd.f32 0.0, %v751
      %v753 = vpop.f32.mrb[0].mxu0
      %v754 = vpop.f32.mrb[0].mxu0
      %v755 = vpop.f32.mrb[0].mxu0
      %756 = vdwg.mxu0
      %758 = vrot.lane.b32.xlu0 %v532, 8
      %v759 = vpop.permute.xlu0 %758
      %762 = vrot.lane.b32.xlu0 %v642, 16
      %v763 = vpop.permute.xlu0 %762
      %766 = vrot.lane.b32.xlu0 %v752, 24
      %v767 = vpop.permute.xlu0 %766
      %v769 = vsel %vm319, %v422, %v759
      %vm770 = vcmask 130048
      %v771 = vsel %vm770, %v769, %v763
      %vm772 = vcmask 195584
      %v773 = vsel %vm772, %v771, %v767
      %v774 = vpack.c.bf16 %v773, %v773
      %v775 = vld [vmem:[%s2] sm:$0xf]
      %v776 = vld [vmem:[%s2 + $0x4] sm:$0xf]
      %v777 = vld [vmem:[%s2 + $0x8] sm:$0xf]
      %v778 = vld [vmem:[%s2 + $0xc] sm:$0xf]
      %v779 = vlaneseq
      %v780 = vshrl.u32 %v779, 7
      %v781 = vsub.s32 1, %v780
      %v782 = vrot.slane %v249, %v781
      %v787 = vunpack.c.l.b16 %v775
      %v788 = vunpack.c.l.b16 %v776
      %v789 = vunpack.c.l.b16 %v777
      %v790 = vunpack.c.l.b16 %v778
      %v791 = vpack.c.b16 %v788, %v787
      %v792 = vpack.c.b16 %v790, %v789
      %v796 = vsel %vm271, %v774, 0
      %798 = vmatprep.subr.bf16.mxu0 0
      %799 = vmatpush1.bf16.msra.mxu0 %v791
      %800 = vmatprep.subr.bf16.mxu0 0
      %801 = vmatpush1.bf16.msra.mxu0 %v792
      %802 = vmatprep.subr.bf16.mxu0 0
      %803 = vmatpush1.bf16.msra.mxu0 0
      %804 = vmatprep.subr.bf16.mxu0 0
      %805 = vmatpush1.bf16.msra.mxu0 0
      %806 = vmatprep.subr.bf16.mxu0 0
      %807 = vmatpush1.bf16.msra.mxu0 0
      %808 = vmatprep.subr.bf16.mxu0 0
      %809 = vmatpush1.bf16.msra.mxu0 0
      %810 = vmatprep.subr.bf16.mxu0 0
      %811 = vmatpush1.bf16.msra.mxu0 0
      %812 = vmatprep.subr.bf16.mxu0 0
      %813 = vmatpush1.bf16.msra.mxu0 0
      %814 = vmatprep.subr.bf16.mxu0 0
      %815 = vmatpush1.bf16.msra.mxu0 0
      %816 = vmatprep.subr.bf16.mxu0 0
      %817 = vmatpush1.bf16.msra.mxu0 0
      %818 = vmatprep.subr.bf16.mxu0 0
      %819 = vmatpush1.bf16.msra.mxu0 0
      %820 = vmatprep.subr.bf16.mxu0 0
      %821 = vmatpush1.bf16.msra.mxu0 0
      %822 = vmatprep.subr.bf16.mxu0 0
      %823 = vmatpush1.bf16.msra.mxu0 0
      %824 = vmatprep.subr.bf16.mxu0 0
      %825 = vmatpush1.bf16.msra.mxu0 0
      %826 = vmatprep.subr.bf16.mxu0 0
      %827 = vmatpush1.bf16.msra.mxu0 0
      %828 = vmatprep.subr.bf16.mxu0 0
      %829 = vmatpush1.bf16.msra.mxu0 0
      %830 = vmatprep.mubr.bf16.mxu0 0
      %831 = vmatmul.mubr.bf16.gmra.mrb[0].mxu0 %v796
      %v832 = vpop.f32.mrb[0].mxu0
      %v833 = vadd.f32 %v782, %v832
      %v834 = vpop.f32.mrb[0].mxu0
      %v835 = vpop.f32.mrb[0].mxu0
      %v836 = vpop.f32.mrb[0].mxu0
      %837 = vdwg.mxu0
      %v838 = vadd.f32 %v248, %v833
      %v839 = vsel %vm271, %v838, 0.0
      %840 = vadd.xlane.f32.xlu0 %v839
      %v841 = vpop.xlane.xlu0 %840
      %v842 = vrcp.pop 32.0
      %v843 = vmul.f32 %v841, %v842
      %v844 = vsub.f32 %v838, %v843
      %v845 = vmul.f32 %v844, %v844
      %v846 = vsel %vm271, %v845, 0.0
      %847 = vadd.xlane.f32.xlu0 %v846
      %v848 = vpop.xlane.xlu0 %847
      %v849 = vmul.f32 %v848, %v842
      %v850 = vadd.f32 %v849, 1e-05
      %v851 = vrsqrt.pop %v850
      %v852 = vmul.f32 %v844, %v851
      %v853 = vlaneseq
      %v854 = vshrl.u32 %v853, 7
      %v855 = vsub.s32 2, %v854
      %v856 = vrot.slane %v249, %v855
      %v857 = vmul.f32 %v852, %v856
      %v858 = vlaneseq
      %v859 = vshrl.u32 %v858, 7
      %v860 = vsub.s32 3, %v859
      %v861 = vrot.slane %v249, %v860
      %v862 = vadd.f32 %v857, %v861
      %v863 = vpack.c.bf16 %v862, %v862
      %v864 = vld [vmem:[%s3] sm:$0xf]
      %v865 = vld [vmem:[%s3 + $0x4] sm:$0xf]
      %v866 = vld [vmem:[%s3 + $0x8] sm:$0xf]
      %v867 = vld [vmem:[%s3 + $0xc] sm:$0xf]
      %v868 = vlaneseq
      %v869 = vshrl.u32 %v868, 7
      %v870 = vsub.s32 4, %v869
      %v871 = vrot.slane %v249, %v870
      %v876 = vunpack.c.l.b16 %v864
      %v877 = vunpack.c.l.b16 %v865
      %v878 = vunpack.c.l.b16 %v866
      %v879 = vunpack.c.l.b16 %v867
      %v880 = vpack.c.b16 %v877, %v876
      %v881 = vpack.c.b16 %v879, %v878
      %v885 = vsel %vm271, %v863, 0
      %887 = vmatprep.subr.bf16.mxu0 0
      %888 = vmatpush1.bf16.msra.mxu0 %v880
      %889 = vmatprep.subr.bf16.mxu0 0
      %890 = vmatpush1.bf16.msra.mxu0 %v881
      %891 = vmatprep.subr.bf16.mxu0 0
      %892 = vmatpush1.bf16.msra.mxu0 0
      %893 = vmatprep.subr.bf16.mxu0 0
      %894 = vmatpush1.bf16.msra.mxu0 0
      %895 = vmatprep.subr.bf16.mxu0 0
      %896 = vmatpush1.bf16.msra.mxu0 0
      %897 = vmatprep.subr.bf16.mxu0 0
      %898 = vmatpush1.bf16.msra.mxu0 0
      %899 = vmatprep.subr.bf16.mxu0 0
      %900 = vmatpush1.bf16.msra.mxu0 0
      %901 = vmatprep.subr.bf16.mxu0 0
      %902 = vmatpush1.bf16.msra.mxu0 0
      %903 = vmatprep.subr.bf16.mxu0 0
      %904 = vmatpush1.bf16.msra.mxu0 0
      %905 = vmatprep.subr.bf16.mxu0 0
      %906 = vmatpush1.bf16.msra.mxu0 0
      %907 = vmatprep.subr.bf16.mxu0 0
      %908 = vmatpush1.bf16.msra.mxu0 0
      %909 = vmatprep.subr.bf16.mxu0 0
      %910 = vmatpush1.bf16.msra.mxu0 0
      %911 = vmatprep.subr.bf16.mxu0 0
      %912 = vmatpush1.bf16.msra.mxu0 0
      %913 = vmatprep.subr.bf16.mxu0 0
      %914 = vmatpush1.bf16.msra.mxu0 0
      %915 = vmatprep.subr.bf16.mxu0 0
      %916 = vmatpush1.bf16.msra.mxu0 0
      %917 = vmatprep.subr.bf16.mxu0 0
      %918 = vmatpush1.bf16.msra.mxu0 0
      %919 = vmatprep.mubr.bf16.mxu0 0
      %920 = vmatmul.mubr.bf16.gmra.mrb[0].mxu0 %v885
      %v921 = vpop.f32.mrb[0].mxu0
      %v922 = vadd.f32 %v871, %v921
      %v923 = vpop.f32.mrb[0].mxu0
      %v924 = vpop.f32.mrb[0].mxu0
      %v925 = vpop.f32.mrb[0].mxu0
      %926 = vdwg.mxu0
      %v927 = vmax.f32 %v922, 0.0
      %v928 = vpack.c.bf16 %v927, %v927
      %v929 = vld [vmem:[%s4] sm:$0xf]
      %v930 = vld [vmem:[%s4 + $0x4] sm:$0xf]
      %v931 = vld [vmem:[%s4 + $0x8] sm:$0xf]
      %v932 = vld [vmem:[%s4 + $0xc] sm:$0xf]
      %v933 = vld [vmem:[%s4 + $0x10] sm:$0xf]
      %v934 = vld [vmem:[%s4 + $0x14] sm:$0xf]
      %v935 = vld [vmem:[%s4 + $0x18] sm:$0xf]
      %v936 = vld [vmem:[%s4 + $0x1c] sm:$0xf]
      %v937 = vlaneseq
      %v938 = vshrl.u32 %v937, 7
      %v939 = vsub.s32 5, %v938
      %v940 = vrot.slane %v249, %v939
      %v949 = vunpack.c.l.b16 %v929
      %v950 = vunpack.c.l.b16 %v930
      %v951 = vunpack.c.l.b16 %v931
      %v952 = vunpack.c.l.b16 %v932
      %v953 = vunpack.c.l.b16 %v933
      %v954 = vunpack.c.l.b16 %v934
      %v955 = vunpack.c.l.b16 %v935
      %v956 = vunpack.c.l.b16 %v936
      %v957 = vpack.c.b16 %v950, %v949
      %v958 = vpack.c.b16 %v952, %v951
      %v959 = vpack.c.b16 %v954, %v953
      %v960 = vpack.c.b16 %v956, %v955
      %vm965 = vcmask 523264
      %v967 = vsel %vm965, %v928, 0
      %969 = vmatprep.subr.bf16.mxu0 0
      %970 = vmatpush1.bf16.msra.mxu0 %v957
      %971 = vmatprep.subr.bf16.mxu0 0
      %972 = vmatpush1.bf16.msra.mxu0 %v958
      %973 = vmatprep.subr.bf16.mxu0 0
      %974 = vmatpush1.bf16.msra.mxu0 %v959
      %975 = vmatprep.subr.bf16.mxu0 0
      %976 = vmatpush1.bf16.msra.mxu0 %v960
      %977 = vmatprep.subr.bf16.mxu0 0
      %978 = vmatpush1.bf16.msra.mxu0 0
      %979 = vmatprep.subr.bf16.mxu0 0
      %980 = vmatpush1.bf16.msra.mxu0 0
      %981 = vmatprep.subr.bf16.mxu0 0
      %982 = vmatpush1.bf16.msra.mxu0 0
      %983 = vmatprep.subr.bf16.mxu0 0
      %984 = vmatpush1.bf16.msra.mxu0 0
      %985 = vmatprep.subr.bf16.mxu0 0
      %986 = vmatpush1.bf16.msra.mxu0 0
      %987 = vmatprep.subr.bf16.mxu0 0
      %988 = vmatpush1.bf16.msra.mxu0 0
      %989 = vmatprep.subr.bf16.mxu0 0
      %990 = vmatpush1.bf16.msra.mxu0 0
      %991 = vmatprep.subr.bf16.mxu0 0
      %992 = vmatpush1.bf16.msra.mxu0 0
      %993 = vmatprep.subr.bf16.mxu0 0
      %994 = vmatpush1.bf16.msra.mxu0 0
      %995 = vmatprep.subr.bf16.mxu0 0
      %996 = vmatpush1.bf16.msra.mxu0 0
      %997 = vmatprep.subr.bf16.mxu0 0
      %998 = vmatpush1.bf16.msra.mxu0 0
      %999 = vmatprep.subr.bf16.mxu0 0
      %1000 = vmatpush1.bf16.msra.mxu0 0
      %1001 = vmatprep.mubr.bf16.mxu0 0
      %1002 = vmatmul.mubr.bf16.gmra.mrb[0].mxu0 %v967
      %v1003 = vpop.f32.mrb[0].mxu0
      %v1004 = vadd.f32 %v940, %v1003
      %v1005 = vpop.f32.mrb[0].mxu0
      %v1006 = vpop.f32.mrb[0].mxu0
      %v1007 = vpop.f32.mrb[0].mxu0
      %1008 = vdwg.mxu0
      %v1009 = vadd.f32 %v862, %v1004
      %v1010 = vsel %vm271, %v1009, 0.0
      %1011 = vadd.xlane.f32.xlu0 %v1010
      %v1012 = vpop.xlane.xlu0 %1011
      %v1013 = vmul.f32 %v1012, %v842
      %v1014 = vsub.f32 %v1009, %v1013
      %v1015 = vmul.f32 %v1014, %v1014
      %v1016 = vsel %vm271, %v1015, 0.0
      %1017 = vadd.xlane.f32.xlu0 %v1016
      %v1018 = vpop.xlane.xlu0 %1017
      %v1019 = vmul.f32 %v1018, %v842
      %v1020 = vadd.f32 %v1019, 1e-05
      %v1021 = vrsqrt.pop %v1020
      %v1022 = vmul.f32 %v1014, %v1021
      %v1023 = vlaneseq
      %v1024 = vshrl.u32 %v1023, 7
      %v1025 = vsub.s32 6, %v1024
      %v1026 = vrot.slane %v249, %v1025
      %v1027 = vmul.f32 %v1022, %v1026
      %v1028 = vlaneseq
      %v1029 = vshrl.u32 %v1028, 7
      %v1030 = vsub.s32 7, %v1029
      %v1031 = vrot.slane %v249, %v1030
      %v1032 = vadd.f32 %v1027, %v1031
      %1033 = vst.msk [vmem:[%s246] sm:$0xff] %vm271, %v1032
      %p1034 = scmp.lt.s32.totalorder %s17, 1
      %s1035 = scalar_select %p1034, %s17, 1
      %s1036 = smul.addr %s1035, 8
      %s1037 = scalar_lea.vmem %s6, %s1036
      // Predicated region
      $region45: #{transformer_block.1} parent=43 // pred_check
        %p1038 = pneg %p166
      $region46: #{transformer_block.1} parent=43 // pred_check_branch
        %1040 = sbr.rel (%p1038) target = $region48
      $region47: #{transformer_block.1} parent=43 // pred_region
        _
      $region48: #{transformer_block.1} parent=43 // pred_fallthru
        _
    $region44: #{transformer_block.1} parent=5 // pred_fallthru
      _
    %p1041 = scmp.le.s32.totalorder 2, %s12
    // Predicated region
    $region49: #{transformer_block.1} parent=5 // pred_check
      %p1042 = pneg %p1041
    $region50: #{transformer_block.1} parent=5 // pred_check_branch
      %1044 = sbr.rel (%p1042) target = $region52
    $region51: #{transformer_block.1} parent=5 // pred_region
      %s1045 = ssub.s32 %s12, 2
      // Predicated region
      $region53: #{transformer_block.1} parent=51 // pred_check
        %p1046 = pneg %p172
      $region54: #{transformer_block.1} parent=51 // pred_check_branch
        %1048 = sbr.rel (%p1046) target = $region56
      $region55: #{transformer_block.1} parent=51 // pred_region
        %p1049 = scmp.lt.s32.totalorder %s18, 1
        %s1050 = scalar_select %p1049, %s18, 1
        %s1051 = smul.addr %s1050, 8
        %s1052 = scalar_lea.vmem %s6, %s1051
      $region56: #{transformer_block.1} parent=51 // pred_fallthru
        _
    $region52: #{transformer_block.1} parent=5 // pred_fallthru
      _
  $region6: #{transformer_block.1} parent=0 // loop_footer
    %s16 = sadd.s32 1, %s12
  $region7: #{transformer_block.1} parent=0 // loop_footer_branch
    %11 = sbr.rel target = $region3
  $region8: #{transformer_block.1} parent=0 // loop_exit
    _

</llo_original>
